<compile_context>
chip_gen: v6e
topology: v6e:2x2x1
jax: 0.10.0
libtpu: 0.0.40
codegen_flags: <defaults>
</compile_context>

<pallas_src>
import numpy as np
import jax
import jax.numpy as jnp
from jax import lax
from jax.experimental import pallas as pl
from jax.experimental.pallas import tpu as pltpu


# --------------------------------------------------------------------------- #
# One-time (init) parameter restack.
# --------------------------------------------------------------------------- #
def restack_conv_params(weight, bias, *, num_layers, num_heads, dims, groups,
                        embed_dim):
    """Restack Conv1d(E*2L -> H*D*2L, ks=1, groups=G*2L) parameters.

    PyTorch weight rows are indexed c_out = ((l*G + g)*out_pg + dd*H + h) with
    l in [0, 2L), out_pg = H*D/G.  Because the module tiles the embedding 2L
    times along channels before the grouped conv, every conv group gt only sees
    the original embedding slice (gt % G), so all 2L copies sharing the same g
    fold into one matmul N dimension:
      w_re: (G, in_pg, Ncol), b_re: (G, 1, Ncol), Ncol = 2L*H*(D/G),
      column c = (l*H + h)*(D/G) + dd  -> downstream (L,2,H,Dg) reshape is free.
    """
    L, H, D, G, E = num_layers, num_heads, dims, groups, embed_dim
    Dg = D // G
    in_pg = E // G
    ncol = 2 * L * H * Dg
    w5 = weight.reshape(2 * L, G, Dg, H, in_pg)              # (l, g, dd, h, i)
    w_re = jnp.transpose(w5, (1, 4, 0, 3, 2)).reshape(G, in_pg, ncol)
    b5 = bias.reshape(2 * L, G, Dg, H)                       # (l, g, dd, h)
    b_re = jnp.transpose(b5, (1, 0, 3, 2)).reshape(G, 1, ncol)
    return w_re, b_re


# --------------------------------------------------------------------------- #
# Tile planning against the per-generation VMEM budget.
# --------------------------------------------------------------------------- #
def _vmem_capacity_bytes():
    try:
        return int(pltpu.get_tpu_info().vmem_capacity_bytes)
    except Exception:
        return 64 << 20          # conservative fallback: fits v5e/v6e/v7x


def _plan_tiles(BK, n, E, G, in_pg, ncol, out_itemsize, budget):
    """Pick (S sequences/step, tile_n conv columns/step) under a VMEM budget.

    Per-step VMEM (every block accounted as double-buffered):
      x: 2*S*n*E*2 (bf16), wrow: 2*S*n*4, w: 2*G*in_pg*tn*2, b: 2*G*tn*4,
      conv out: 2*G*S*n*tn*out_itemsize, pool out: 2*S*E*4.
    """
    def block_bytes(S, tn):
        return (2 * S * n * E * 2 + 2 * S * n * 4
                + 2 * G * in_pg * tn * 2 + 2 * G * tn * 4
                + 2 * G * S * n * tn * out_itemsize + 2 * S * E * 4)

    # Legal S: divides BK and (== BK or multiple of 8)  [(8,128) block rule].
    s_all = [s for s in range(BK, 0, -1)
             if BK % s == 0 and (s == BK or s % 8 == 0)]
    # Prefer >= 2 sequence steps (keeps the "parallel" axis splittable across
    # v7x's two TensorCores) as long as each step keeps >= 512 rows for the MXU.
    s_pref = [s for s in s_all if BK // s >= 2 and s * n >= 512]
    s_order = s_pref + [s for s in s_all if s not in s_pref]
    # Legal tile_n: divides ncol and (== ncol or multiple of 128); lane-dense.
    n_cands = [t for t in range(ncol, 0, -1)
               if ncol % t == 0 and (t == ncol or t % 128 == 0)]

    for require_wide in (True, False):       # first pass insists on wide tiles
        for S in s_order:
            for tn in n_cands:
                if require_wide and tn < min(512, ncol):
                    continue
                if block_bytes(S, tn) <= budget:
                    return S, tn, block_bytes(S, tn)
    S, tn = s_all[-1], n_cands[-1]            # smallest legal; best effort
    return S, tn, block_bytes(S, tn)


# --------------------------------------------------------------------------- #
# Fused kernel: masked mean pooling (VPU) + grouped 1x1 conv (MXU).
# --------------------------------------------------------------------------- #
def _build_kernel(groups, in_pg, S, n):
    unroll_pool = S <= 32        # static slices for small S; fori_loop otherwise

    def kernel(x_ref, wrow_ref, w_ref, b_ref, conv_ref, pool_ref):
        # x_ref    : (S*n, E)         bf16  S sequences x n tokens, channel-last
        # wrow_ref : (S*n, 1)         f32   attention_mask / max(seq_len, 1)
        # w_ref    : (G, in_pg, tn)   bf16  conv weights (ncol tile)
        # b_ref    : (G, 1, tn)       f32   conv bias    (ncol tile)
        # conv_ref : (G, S*n, tn)     bf16  out
        # pool_ref : (S, E)           f32   out

        # Masked mean pooling: VPU multiply + sublane reduction per sequence.
        # Runs on VPU/XLU slots that are idle while the MXU does the conv; it
        # is recomputed on every ncol step (cost ~ E/ncol of the conv work) so
        # every grid step writes a fully-defined pool block.
        def pool_one(s):
            rows = x_ref[pl.ds(s * n, n), :]          # (n, E)  bf16
            wts = wrow_ref[pl.ds(s * n, n), :]        # (n, 1)  f32
            pool_ref[pl.ds(s, 1), :] = jnp.sum(rows * wts, axis=0, keepdims=True)

        if unroll_pool:
            for s in range(S):
                pool_one(s)
        else:
            def pool_body(s, carry):
                pool_one(s)
                return carry
            lax.fori_loop(0, S, pool_body, 0)

        # Grouped 1x1 conv: one lane-dense (S*n, in_pg) @ (in_pg, tn) MXU
        # matmul per group (static unroll, static ref slices), f32 accumulate,
        # bf16 writeback (halves the HBM writeback of the dominant output).
        for g in range(groups):
            xg = x_ref[:, g * in_pg:(g + 1) * in_pg]
            acc = jnp.dot(xg, w_ref[g], preferred_element_type=jnp.float32)
            conv_ref[g] = (acc + b_ref[g]).astype(conv_ref.dtype)

    return kernel


def fused_pool_grouped_conv(emb, attn_mask, w_re, b_re):
    """emb: (BK, n, E); attn_mask: (BK, n); w_re: (G, in_pg, Ncol); b_re: (G,1,Ncol).

    Returns conv_out (G, BK*n, Ncol) bf16 and pooler (BK, E) f32."""
    BK, n, E = emb.shape
    G, in_pg, ncol = w_re.shape
    assert in_pg * G == E

    out_dtype = jnp.bfloat16
    cap = _vmem_capacity_bytes()
    budget = int(cap * 0.8)          # headroom: ~51 MiB on v7x, ~102 MiB v5e/v6e
    S, tile_n, need = _plan_tiles(BK, n, E, G, in_pg, ncol,
                                  jnp.dtype(out_dtype).itemsize, budget)
    nb, nc = BK // S, ncol // tile_n

    # bf16 MXU datapath; f32 accumulation inside the kernel.
    x2 = emb.astype(jnp.bfloat16).reshape(BK * n, E)        # free view reshape
    mask_f = attn_mask.astype(jnp.float32)
    inv_len = 1.0 / jnp.maximum(jnp.sum(mask_f, axis=1, keepdims=True), 1.0)
    # Per-token pooling weight; zero-length sequences pool to 0 (the PyTorch
    # reference would produce NaN there -- intentional deviation).
    wrow = (mask_f * inv_len).reshape(BK * n, 1)
    w_bf = w_re.astype(jnp.bfloat16)
    b_f32 = b_re.astype(jnp.float32)

    # Grid ordering: the operand that costs less to re-stream goes on the inner
    # axis (the other stays VMEM-resident across that sweep).  Bias toward the
    # weights-inner ordering, which also keeps the "parallel" sequence axis
    # leading (megacore-splittable on v7x).
    w_pass = G * in_pg * ncol * 2 + G * ncol * 4            # one weight pass
    x_pass = BK * n * E * 2 + BK * n * 4                    # one embedding pass
    weights_inner = nb * w_pass <= 2 * nc * x_pass
    if weights_inner:
        grid = (nb, nc)
        sem = ("parallel", "arbitrary")
        b_of = lambda b, c: b
        c_of = lambda b, c: c
    else:
        grid = (nc, nb)
        # Keep both axes "arbitrary" here: parallel dims are kept leading in
        # the other ordering; this fallback trades megacore split for fewer
        # embedding re-reads.
        sem = ("arbitrary", "arbitrary")
        b_of = lambda c, b: b
        c_of = lambda c, b: c

    in_specs = [
        pl.BlockSpec((S * n, E), lambda *i: (b_of(*i), 0)),          # emb rows
        pl.BlockSpec((S * n, 1), lambda *i: (b_of(*i), 0)),          # mask/len
        pl.BlockSpec((G, in_pg, tile_n), lambda *i: (0, 0, c_of(*i))),  # weights
        pl.BlockSpec((G, 1, tile_n), lambda *i: (0, 0, c_of(*i))),      # bias
    ]
    out_specs = (
        pl.BlockSpec((G, S * n, tile_n), lambda *i: (0, b_of(*i), c_of(*i))),
        pl.BlockSpec((S, E), lambda *i: (b_of(*i), 0)),
    )

    # VMEM limit: >= the modeled need (with margin), <= physical capacity.
    vmem_limit = int(min(int(cap * 0.95), max(int(need * 1.5), 4 << 20)))

    out_b = jnp.dtype(out_dtype).itemsize
    flops = 2 * BK * n * E * ncol + 2 * BK * n * E
    bytes_accessed = (BK * n * E * 2 + BK * n * 4
                      + G * in_pg * ncol * 2 + G * ncol * 4
                      + G * BK * n * ncol * out_b + BK * E * 4)

    conv_out, pooler = pl.pallas_call(
        _build_kernel(G, in_pg, S, n),
        out_shape=(jax.ShapeDtypeStruct((G, BK * n, ncol), out_dtype),
                   jax.ShapeDtypeStruct((BK, E), jnp.float32)),
        grid=grid,
        in_specs=in_specs,
        out_specs=out_specs,
        compiler_params=pltpu.CompilerParams(
            dimension_semantics=sem,
            vmem_limit_bytes=vmem_limit),
        cost_estimate=pl.CostEstimate(flops=flops, transcendentals=0,
                                      bytes_accessed=bytes_accessed),
    )(x2, wrow, w_bf, b_f32)
    return conv_out, pooler


# --------------------------------------------------------------------------- #
# Full forward (post-contriever part of KnowEncoder.forward).
# --------------------------------------------------------------------------- #
def know_encoder_forward(emb, attn_mask, conv_weight, conv_bias, *,
                         k, num_layers, num_heads, dims, groups,
                         dtype=jnp.float32):
    """emb: (B*k, n, E) token embeddings (stand-in for contriever y[0]);
    attn_mask: (B*k, n); conv_weight: (2*L*H*D, E//G); conv_bias: (2*L*H*D,).
    Returns (pooler (B*k, E), batch (L, 2, B, H, maxL, D), masks (B, maxL))."""
    BK, n, E = emb.shape
    assert BK % k == 0
    B = BK // k
    L, H, D, G = num_layers, num_heads, dims, groups
    assert D % G == 0 and E % G == 0
    Dg = D // G

    # One-time parameter restack (init-time work in a real deployment).
    w_re, b_re = restack_conv_params(conv_weight, conv_bias, num_layers=L,
                                     num_heads=H, dims=D, groups=G, embed_dim=E)

    conv_out, pooler = fused_pool_grouped_conv(emb, attn_mask, w_re, b_re)

    # ---- variable-length packing (replaces the per-(i,j) python loop) ----
    # TODO(synk): the padded length is data dependent (mask sums), so one host
    # sync is unavoidable -- but only the BK device-reduced lengths are moved.
    lens = np.asarray(jax.device_get(jnp.sum(attn_mask, axis=1))).astype(np.int64)
    totals = lens.reshape(B, k).sum(axis=1)
    max_len = int(totals.max())
    # Source positions in the flattened (k*n) token axis; pad slots point out
    # of range so jnp.take(mode="fill") writes zeros -- no extra masking pass
    # over the (L,2,B,H,maxL,D) tensor.  (Assumes prefix attention masks, same
    # as the reference slicing.)
    idx = np.full((B, max_len), k * n, dtype=np.int32)
    valid = np.zeros((B, max_len), dtype=np.int32)
    for i in range(B):
        pos = np.concatenate(
            [j * n + np.arange(int(lens[i * k + j])) for j in range(k)])
        idx[i, :pos.size] = pos
        valid[i, :pos.size] = 1
    idx_dev = jnp.asarray(idx)            # (B, maxL) source positions in k*n
    masks = jnp.asarray(valid)            # (B, maxL) 1 = real, 0 = pad

    # conv_out columns are already ordered (L, 2, H, Dg) and group g carries the
    # contiguous d-slab [g*Dg, (g+1)*Dg): a single bf16 transpose + one
    # fill-gather reach the final (L, 2, B, H, maxL, D) layout.
    y = conv_out.reshape(G, B, k, n, L, 2, H, Dg)
    y = jnp.transpose(y, (4, 5, 1, 6, 2, 3, 0, 7))       # (L, 2, B, H, k, n, G, Dg)
    y = y.reshape(L, 2, B, H, k * n, D)
    batch = jax.vmap(
        lambda yb, ib: jnp.take(yb, ib, axis=3, mode="fill", fill_value=0),
        in_axes=(2, 0), out_axes=2)(y, idx_dev)
    batch = batch.astype(dtype)
    return pooler.astype(dtype), batch, masks


if __name__ == "__main__":
    key = jax.random.PRNGKey(0)
    # Small synthetic configuration (module defaults are far larger).
    B, k, n = 2, 2, 8
    E = 32                      # contriever hidden size stand-in
    L, H, D, G = 2, 4, 8, 4     # num_layers, num_heads, dims, groups
    BK = B * k
    in_pg = E // G
    out_pg = (H * D) // G
    C_out = 2 * L * H * D

    k1, k2, k3 = jax.random.split(key, 3)
    # TODO(synk): facebook/contriever transformer + tokenizer are not
    # reimplemented; `emb` stands in for the token-embedding output y[0].
    emb = jax.random.normal(k1, (BK, n, E), jnp.float32)
    lens_np = np.array([8, 6, 7, 5], dtype=np.int32)
    attn_mask = jnp.asarray((np.arange(n)[None, :] < lens_np[:, None]).astype(np.int32))

    conv_weight = jax.random.normal(k2, (C_out, in_pg), jnp.float32) * 0.05
    conv_bias = jax.random.normal(k3, (C_out,), jnp.float32) * 0.05

    pooler, batch, masks = know_encoder_forward(
        emb, attn_mask, conv_weight, conv_bias,
        k=k, num_layers=L, num_heads=H, dims=D, groups=G)
    jax.block_until_ready((pooler, batch, masks))

    # ------------- pure-JAX reference (mirrors the PyTorch ops) ------------- #
    emb_bf = emb.astype(jnp.bfloat16).astype(jnp.float32)
    w_bf = conv_weight.astype(jnp.bfloat16).astype(jnp.float32)
    mask_f = attn_mask.astype(jnp.float32)

    pool_ref = (emb_bf * mask_f[..., None]).sum(1) / mask_f.sum(1, keepdims=True)

    xg = emb_bf.reshape(BK, n, G, in_pg)
    w4 = w_bf.reshape(2 * L, G, out_pg, in_pg)
    b4 = conv_bias.reshape(2 * L, G, out_pg)
    t1 = jnp.einsum('lgoi,btgi->blgot', w4, xg) + b4[None, :, :, :, None]
    conv_full = t1.reshape(BK, C_out, n)                 # PyTorch Conv1d output
    # Kernel writes the conv activations back in bf16; mirror that rounding.
    conv_full = conv_full.astype(jnp.bfloat16).astype(jnp.float32)
    yr = conv_full.reshape(B, k, L, 2, D, H, n)
    yr = jnp.transpose(yr, (0, 1, 2, 3, 5, 6, 4))        # (B, k, L, 2, H, n, D)
    per, per_len = [], []
    for i in range(B):
        cats = [yr[i, j, :, :, :, :int(lens_np[i * k + j]), :] for j in range(k)]
        cat = jnp.concatenate(cats, axis=-2)
        cat = jnp.transpose(cat, (3, 0, 1, 2, 4))
        per.append(cat)
        per_len.append(cat.shape[0])
    maxL = max(per_len)
    batch_ref = jnp.stack(
        [jnp.pad(c, ((0, maxL - c.shape[0]),) + ((0, 0),) * 4) for c in per], 0)
    batch_ref = jnp.transpose(batch_ref, (2, 3, 0, 4, 1, 5))   # (L,2,B,H,maxL,D)
    masks_ref = np.stack(
        [np.concatenate([np.ones(t, np.int32), np.zeros(maxL - t, np.int32)])
         for t in per_len], 0)

    assert pooler.shape == (BK, E)
    assert batch.shape == (L, 2, B, H, maxL, D)
    assert masks.shape == (B, maxL)
    np.testing.assert_allclose(np.asarray(pooler), np.asarray(pool_ref),
                               atol=5e-4, rtol=5e-4)
    np.testing.assert_allclose(np.asarray(batch), np.asarray(batch_ref),
                               atol=3e-3, rtol=3e-2)
    assert np.array_equal(np.asarray(masks), masks_ref)
    print("KERNEL_OK")
</pallas_src>

<mosaic_0001>
module attributes {stable_mosaic.version = 11 : i64} {
  func.func @kernel(%arg0: i32, %arg1: i32, %arg2: memref<32x32xbf16, #tpu.memory_space<vmem>>, %arg3: memref<32x1xf32, #tpu.memory_space<vmem>>, %arg4: memref<4x8x32xbf16, #tpu.memory_space<vmem>>, %arg5: memref<4x1x32xf32, #tpu.memory_space<vmem>>, %arg6: memref<4x32x32xbf16, #tpu.memory_space<vmem>>, %arg7: memref<4x32xf32, #tpu.memory_space<vmem>>) attributes {dimension_semantics = [#tpu.dimension_semantics<parallel>, #tpu.dimension_semantics<arbitrary>], iteration_bounds = array<i64: 1, 1>, scalar_prefetch = 0 : i64, scratch_operands = 0 : i64, tpu.core_type = #tpu.core_type<tc>, window_params = [{transform_indices = @transform_0, window_bounds = array<i64: 32, 32>}, {transform_indices = @transform_1, window_bounds = array<i64: 32, 1>}, {transform_indices = @transform_2, window_bounds = array<i64: 4, 8, 32>}, {transform_indices = @transform_3, window_bounds = array<i64: 4, 1, 32>}, {transform_indices = @transform_4, window_bounds = array<i64: 4, 32, 32>}, {transform_indices = @transform_5, window_bounds = array<i64: 4, 32>}]} {
    %c0 = arith.constant 0 : index
    %c0_0 = arith.constant 0 : index
    %0 = vector.load %arg2[%c0, %c0_0] : memref<32x32xbf16, #tpu.memory_space<vmem>>, vector<8x32xbf16>
    %c0_1 = arith.constant 0 : index
    %c0_2 = arith.constant 0 : index
    %1 = vector.load %arg3[%c0_1, %c0_2] : memref<32x1xf32, #tpu.memory_space<vmem>>, vector<8x1xf32>
    %2 = arith.extf %0 : vector<8x32xbf16> to vector<8x32xf32>
    %3 = vector.broadcast %1 : vector<8x1xf32> to vector<8x32xf32>
    %4 = arith.mulf %2, %3 : vector<8x32xf32>
    %cst = arith.constant dense<0.000000e+00> : vector<32xf32>
    %5 = vector.multi_reduction <add>, %4, %cst [0] : vector<8x32xf32> to vector<32xf32>
    %6 = vector.shape_cast %5 : vector<32xf32> to vector<1x32xf32>
    %c0_3 = arith.constant 0 : index
    %c0_4 = arith.constant 0 : index
    %7 = vector.load %arg7[%c0_3, %c0_4] : memref<4x32xf32, #tpu.memory_space<vmem>>, vector<1x32xf32>
    tpu.vector_store %arg7[%c0_3, %c0_4], %6 {strides = array<i32>} : memref<4x32xf32, #tpu.memory_space<vmem>>, vector<1x32xf32>,
    %c8 = arith.constant 8 : index
    %c0_5 = arith.constant 0 : index
    %8 = vector.load %arg2[%c8, %c0_5] : memref<32x32xbf16, #tpu.memory_space<vmem>>, vector<8x32xbf16>
    %c8_6 = arith.constant 8 : index
    %c0_7 = arith.constant 0 : index
    %9 = vector.load %arg3[%c8_6, %c0_7] : memref<32x1xf32, #tpu.memory_space<vmem>>, vector<8x1xf32>
    %10 = arith.extf %8 : vector<8x32xbf16> to vector<8x32xf32>
    %11 = vector.broadcast %9 : vector<8x1xf32> to vector<8x32xf32>
    %12 = arith.mulf %10, %11 : vector<8x32xf32>
    %cst_8 = arith.constant dense<0.000000e+00> : vector<32xf32>
    %13 = vector.multi_reduction <add>, %12, %cst_8 [0] : vector<8x32xf32> to vector<32xf32>
    %14 = vector.shape_cast %13 : vector<32xf32> to vector<1x32xf32>
    %c1 = arith.constant 1 : index
    %c0_9 = arith.constant 0 : index
    %15 = vector.load %arg7[%c1, %c0_9] : memref<4x32xf32, #tpu.memory_space<vmem>>, vector<1x32xf32>
    tpu.vector_store %arg7[%c1, %c0_9], %14 {strides = array<i32>} : memref<4x32xf32, #tpu.memory_space<vmem>>, vector<1x32xf32>,
    %c16 = arith.constant 16 : index
    %c0_10 = arith.constant 0 : index
    %16 = vector.load %arg2[%c16, %c0_10] : memref<32x32xbf16, #tpu.memory_space<vmem>>, vector<8x32xbf16>
    %c16_11 = arith.constant 16 : index
    %c0_12 = arith.constant 0 : index
    %17 = vector.load %arg3[%c16_11, %c0_12] : memref<32x1xf32, #tpu.memory_space<vmem>>, vector<8x1xf32>
    %18 = arith.extf %16 : vector<8x32xbf16> to vector<8x32xf32>
    %19 = vector.broadcast %17 : vector<8x1xf32> to vector<8x32xf32>
    %20 = arith.mulf %18, %19 : vector<8x32xf32>
    %cst_13 = arith.constant dense<0.000000e+00> : vector<32xf32>
    %21 = vector.multi_reduction <add>, %20, %cst_13 [0] : vector<8x32xf32> to vector<32xf32>
    %22 = vector.shape_cast %21 : vector<32xf32> to vector<1x32xf32>
    %c2 = arith.constant 2 : index
    %c0_14 = arith.constant 0 : index
    %23 = vector.load %arg7[%c2, %c0_14] : memref<4x32xf32, #tpu.memory_space<vmem>>, vector<1x32xf32>
    tpu.vector_store %arg7[%c2, %c0_14], %22 {strides = array<i32>} : memref<4x32xf32, #tpu.memory_space<vmem>>, vector<1x32xf32>,
    %c24 = arith.constant 24 : index
    %c0_15 = arith.constant 0 : index
    %24 = vector.load %arg2[%c24, %c0_15] : memref<32x32xbf16, #tpu.memory_space<vmem>>, vector<8x32xbf16>
    %c24_16 = arith.constant 24 : index
    %c0_17 = arith.constant 0 : index
    %25 = vector.load %arg3[%c24_16, %c0_17] : memref<32x1xf32, #tpu.memory_space<vmem>>, vector<8x1xf32>
    %26 = arith.extf %24 : vector<8x32xbf16> to vector<8x32xf32>
    %27 = vector.broadcast %25 : vector<8x1xf32> to vector<8x32xf32>
    %28 = arith.mulf %26, %27 : vector<8x32xf32>
    %cst_18 = arith.constant dense<0.000000e+00> : vector<32xf32>
    %29 = vector.multi_reduction <add>, %28, %cst_18 [0] : vector<8x32xf32> to vector<32xf32>
    %30 = vector.shape_cast %29 : vector<32xf32> to vector<1x32xf32>
    %c3 = arith.constant 3 : index
    %c0_19 = arith.constant 0 : index
    %31 = vector.load %arg7[%c3, %c0_19] : memref<4x32xf32, #tpu.memory_space<vmem>>, vector<1x32xf32>
    tpu.vector_store %arg7[%c3, %c0_19], %30 {strides = array<i32>} : memref<4x32xf32, #tpu.memory_space<vmem>>, vector<1x32xf32>,
    %c0_20 = arith.constant 0 : index
    %c0_21 = arith.constant 0 : index
    %32 = vector.load %arg2[%c0_20, %c0_21] : memref<32x32xbf16, #tpu.memory_space<vmem>>, vector<32x8xbf16>
    %c0_22 = arith.constant 0 : index
    %c0_23 = arith.constant 0 : index
    %c0_24 = arith.constant 0 : index
    %33 = vector.load %arg4[%c0_22, %c0_23, %c0_24] : memref<4x8x32xbf16, #tpu.memory_space<vmem>>, vector<1x8x32xbf16>
    %34 = vector.shape_cast %33 : vector<1x8x32xbf16> to vector<8x32xbf16>
    %cst_25 = arith.constant dense<0.000000e+00> : vector<32x32xf32>
    %35 = tpu.matmul %32, %34, %cst_25 {dimension_numbers = #tpu.dot_dimension_numbers<[1], [0], [0], [1], [0, 0, 1, 1], [], []>} : vector<32x8xbf16>, vector<8x32xbf16>, vector<32x32xf32> -> vector<32x32xf32>
    %c0_26 = arith.constant 0 : index
    %c0_27 = arith.constant 0 : index
    %c0_28 = arith.constant 0 : index
    %36 = vector.load %arg5[%c0_26, %c0_27, %c0_28] : memref<4x1x32xf32, #tpu.memory_space<vmem>>, vector<1x1x32xf32>
    %37 = vector.shape_cast %36 : vector<1x1x32xf32> to vector<1x32xf32>
    %38 = vector.broadcast %37 : vector<1x32xf32> to vector<32x32xf32>
    %39 = arith.addf %35, %38 : vector<32x32xf32>
    %40 = arith.truncf %39 : vector<32x32xf32> to vector<32x32xbf16>
    %c0_29 = arith.constant 0 : index
    %c0_30 = arith.constant 0 : index
    %c0_31 = arith.constant 0 : index
    %41 = vector.load %arg6[%c0_29, %c0_30, %c0_31] : memref<4x32x32xbf16, #tpu.memory_space<vmem>>, vector<1x32x32xbf16>
    %42 = vector.shape_cast %41 : vector<1x32x32xbf16> to vector<32x32xbf16>
    %43 = vector.shape_cast %40 : vector<32x32xbf16> to vector<1x32x32xbf16>
    tpu.vector_store %arg6[%c0_29, %c0_30, %c0_31], %43 {strides = array<i32>} : memref<4x32x32xbf16, #tpu.memory_space<vmem>>, vector<1x32x32xbf16>,
    %c0_32 = arith.constant 0 : index
    %c8_33 = arith.constant 8 : index
    %44 = vector.load %arg2[%c0_32, %c8_33] : memref<32x32xbf16, #tpu.memory_space<vmem>>, vector<32x8xbf16>
    %c1_34 = arith.constant 1 : index
    %c0_35 = arith.constant 0 : index
    %c0_36 = arith.constant 0 : index
    %45 = vector.load %arg4[%c1_34, %c0_35, %c0_36] : memref<4x8x32xbf16, #tpu.memory_space<vmem>>, vector<1x8x32xbf16>
    %46 = vector.shape_cast %45 : vector<1x8x32xbf16> to vector<8x32xbf16>
    %cst_37 = arith.constant dense<0.000000e+00> : vector<32x32xf32>
    %47 = tpu.matmul %44, %46, %cst_37 {dimension_numbers = #tpu.dot_dimension_numbers<[1], [0], [0], [1], [0, 0, 1, 1], [], []>} : vector<32x8xbf16>, vector<8x32xbf16>, vector<32x32xf32> -> vector<32x32xf32>
    %c1_38 = arith.constant 1 : index
    %c0_39 = arith.constant 0 : index
    %c0_40 = arith.constant 0 : index
    %48 = vector.load %arg5[%c1_38, %c0_39, %c0_40] : memref<4x1x32xf32, #tpu.memory_space<vmem>>, vector<1x1x32xf32>
    %49 = vector.shape_cast %48 : vector<1x1x32xf32> to vector<1x32xf32>
    %50 = vector.broadcast %49 : vector<1x32xf32> to vector<32x32xf32>
    %51 = arith.addf %47, %50 : vector<32x32xf32>
    %52 = arith.truncf %51 : vector<32x32xf32> to vector<32x32xbf16>
    %c1_41 = arith.constant 1 : index
    %c0_42 = arith.constant 0 : index
    %c0_43 = arith.constant 0 : index
    %53 = vector.load %arg6[%c1_41, %c0_42, %c0_43] : memref<4x32x32xbf16, #tpu.memory_space<vmem>>, vector<1x32x32xbf16>
    %54 = vector.shape_cast %53 : vector<1x32x32xbf16> to vector<32x32xbf16>
    %55 = vector.shape_cast %52 : vector<32x32xbf16> to vector<1x32x32xbf16>
    tpu.vector_store %arg6[%c1_41, %c0_42, %c0_43], %55 {strides = array<i32>} : memref<4x32x32xbf16, #tpu.memory_space<vmem>>, vector<1x32x32xbf16>,
    %c0_44 = arith.constant 0 : index
    %c16_45 = arith.constant 16 : index
    %56 = vector.load %arg2[%c0_44, %c16_45] : memref<32x32xbf16, #tpu.memory_space<vmem>>, vector<32x8xbf16>
    %c2_46 = arith.constant 2 : index
    %c0_47 = arith.constant 0 : index
    %c0_48 = arith.constant 0 : index
    %57 = vector.load %arg4[%c2_46, %c0_47, %c0_48] : memref<4x8x32xbf16, #tpu.memory_space<vmem>>, vector<1x8x32xbf16>
    %58 = vector.shape_cast %57 : vector<1x8x32xbf16> to vector<8x32xbf16>
    %cst_49 = arith.constant dense<0.000000e+00> : vector<32x32xf32>
    %59 = tpu.matmul %56, %58, %cst_49 {dimension_numbers = #tpu.dot_dimension_numbers<[1], [0], [0], [1], [0, 0, 1, 1], [], []>} : vector<32x8xbf16>, vector<8x32xbf16>, vector<32x32xf32> -> vector<32x32xf32>
    %c2_50 = arith.constant 2 : index
    %c0_51 = arith.constant 0 : index
    %c0_52 = arith.constant 0 : index
    %60 = vector.load %arg5[%c2_50, %c0_51, %c0_52] : memref<4x1x32xf32, #tpu.memory_space<vmem>>, vector<1x1x32xf32>
    %61 = vector.shape_cast %60 : vector<1x1x32xf32> to vector<1x32xf32>
    %62 = vector.broadcast %61 : vector<1x32xf32> to vector<32x32xf32>
    %63 = arith.addf %59, %62 : vector<32x32xf32>
    %64 = arith.truncf %63 : vector<32x32xf32> to vector<32x32xbf16>
    %c2_53 = arith.constant 2 : index
    %c0_54 = arith.constant 0 : index
    %c0_55 = arith.constant 0 : index
    %65 = vector.load %arg6[%c2_53, %c0_54, %c0_55] : memref<4x32x32xbf16, #tpu.memory_space<vmem>>, vector<1x32x32xbf16>
    %66 = vector.shape_cast %65 : vector<1x32x32xbf16> to vector<32x32xbf16>
    %67 = vector.shape_cast %64 : vector<32x32xbf16> to vector<1x32x32xbf16>
    tpu.vector_store %arg6[%c2_53, %c0_54, %c0_55], %67 {strides = array<i32>} : memref<4x32x32xbf16, #tpu.memory_space<vmem>>, vector<1x32x32xbf16>,
    %c0_56 = arith.constant 0 : index
    %c24_57 = arith.constant 24 : index
    %68 = vector.load %arg2[%c0_56, %c24_57] : memref<32x32xbf16, #tpu.memory_space<vmem>>, vector<32x8xbf16>
    %c3_58 = arith.constant 3 : index
    %c0_59 = arith.constant 0 : index
    %c0_60 = arith.constant 0 : index
    %69 = vector.load %arg4[%c3_58, %c0_59, %c0_60] : memref<4x8x32xbf16, #tpu.memory_space<vmem>>, vector<1x8x32xbf16>
    %70 = vector.shape_cast %69 : vector<1x8x32xbf16> to vector<8x32xbf16>
    %cst_61 = arith.constant dense<0.000000e+00> : vector<32x32xf32>
    %71 = tpu.matmul %68, %70, %cst_61 {dimension_numbers = #tpu.dot_dimension_numbers<[1], [0], [0], [1], [0, 0, 1, 1], [], []>} : vector<32x8xbf16>, vector<8x32xbf16>, vector<32x32xf32> -> vector<32x32xf32>
    %c3_62 = arith.constant 3 : index
    %c0_63 = arith.constant 0 : index
    %c0_64 = arith.constant 0 : index
    %72 = vector.load %arg5[%c3_62, %c0_63, %c0_64] : memref<4x1x32xf32, #tpu.memory_space<vmem>>, vector<1x1x32xf32>
    %73 = vector.shape_cast %72 : vector<1x1x32xf32> to vector<1x32xf32>
    %74 = vector.broadcast %73 : vector<1x32xf32> to vector<32x32xf32>
    %75 = arith.addf %71, %74 : vector<32x32xf32>
    %76 = arith.truncf %75 : vector<32x32xf32> to vector<32x32xbf16>
    %c3_65 = arith.constant 3 : index
    %c0_66 = arith.constant 0 : index
    %c0_67 = arith.constant 0 : index
    %77 = vector.load %arg6[%c3_65, %c0_66, %c0_67] : memref<4x32x32xbf16, #tpu.memory_space<vmem>>, vector<1x32x32xbf16>
    %78 = vector.shape_cast %77 : vector<1x32x32xbf16> to vector<32x32xbf16>
    %79 = vector.shape_cast %76 : vector<32x32xbf16> to vector<1x32x32xbf16>
    tpu.vector_store %arg6[%c3_65, %c0_66, %c0_67], %79 {strides = array<i32>} : memref<4x32x32xbf16, #tpu.memory_space<vmem>>, vector<1x32x32xbf16>,
    return
  }
  func.func @transform_0(%arg0: i32, %arg1: i32) -> (i32, i32) {
    %c0_i32 = arith.constant 0 : i32
    %c0_i32_0 = arith.constant 0 : i32
    return %arg0, %c0_i32 : i32, i32
  }
  func.func @transform_1(%arg0: i32, %arg1: i32) -> (i32, i32) {
    %c0_i32 = arith.constant 0 : i32
    %c0_i32_0 = arith.constant 0 : i32
    return %arg0, %c0_i32 : i32, i32
  }
  func.func @transform_2(%arg0: i32, %arg1: i32) -> (i32, i32, i32) {
    %c0_i32 = arith.constant 0 : i32
    %c0_i32_0 = arith.constant 0 : i32
    %c0_i32_1 = arith.constant 0 : i32
    return %c0_i32, %c0_i32_0, %arg1 : i32, i32, i32
  }
  func.func @transform_3(%arg0: i32, %arg1: i32) -> (i32, i32, i32) {
    %c0_i32 = arith.constant 0 : i32
    %c0_i32_0 = arith.constant 0 : i32
    %c0_i32_1 = arith.constant 0 : i32
    return %c0_i32, %c0_i32_0, %arg1 : i32, i32, i32
  }
  func.func @transform_4(%arg0: i32, %arg1: i32) -> (i32, i32, i32) {
    %c0_i32 = arith.constant 0 : i32
    %c0_i32_0 = arith.constant 0 : i32
    return %c0_i32, %arg0, %arg1 : i32, i32, i32
  }
  func.func @transform_5(%arg0: i32, %arg1: i32) -> (i32, i32) {
    %c0_i32 = arith.constant 0 : i32
    %c0_i32_0 = arith.constant 0 : i32
    return %arg0, %c0_i32 : i32, i32
  }
}

</mosaic_0001>

<llo_original>
// kernel: tpu_custom_call.1
$region0: #{tpu_custom_call.1}
  #allocation0 [shape = 'u32[]', space=smem, size = 0x4, offset = 0x4, fixed_abs, tag = 'smem constant byte address 0x4 - core index']
  #allocation1 [shape = 'u32[144,128]{1,0:T(1,128)}', space=vmem, size = 0x12000, scoped, tag = 'internal scratch']
  %s0 = inlined_call_operand.vmem [shape: bf16[32,32], index: 0, kind: input, shape index: {}]
  %s1 = inlined_call_operand.vmem [shape: f32[32,1], index: 1, kind: input, shape index: {}]
  %s2 = inlined_call_operand.vmem [shape: bf16[4,8,32], index: 2, kind: input, shape index: {}]
  %s3 = inlined_call_operand.vmem [shape: f32[4,1,32], index: 3, kind: input, shape index: {}]
  %s4 = inlined_call_operand.hbm [shape: bf16[4,32,32], index: 4, kind: output, shape index: {0}]
  %s5 = inlined_call_operand.hbm [shape: f32[4,32], index: 5, kind: output, shape index: {1}]
  %6 = xla_tuple %s4, %s5
  %s7 = sld [smem:[#allocation0]]
  $region34: #{tpu_custom_call.1} parent=0
    _
  %s9 = ssub.s32 1, %s7
  %s10 = scalar_select 0, %s9, %s7
  $region1: #{tpu_custom_call.1} parent=0
    #allocation2 [shape = 'u8[32768]{0}', space=vmem, size = 0x8000, scoped, tag = 'output window, operand 0, single buffered']
    #allocation3 [shape = 's32[1]{0}', space=sflag, size = 0x4, scoped, tag = 'scoped memory for tpu_custom_call.1']
    #allocation4 [shape = 'u8[2048]{0}', space=vmem, size = 0x800, scoped, tag = 'output window, operand 1, single buffered']
    #allocation5 [shape = 's32[1]{0}', space=sflag, size = 0x4, scoped, tag = 'scoped memory for tpu_custom_call.1']
    %11 = vsyncpa [#allocation3], 0
    %12 = vsyncpa [#allocation5], 0
    // Predicated region
    $region2: #{tpu_custom_call.1} parent=1 // pred_check
      _
    $region3: #{tpu_custom_call.1} parent=1 // pred_check_branch
      %14 = sbr.rel (0) target = $region5
    $region4: #{tpu_custom_call.1} parent=1 // pred_region
      _
    $region5: #{tpu_custom_call.1} parent=1 // pred_fallthru
      _
    // Predicated region
    $region6: #{tpu_custom_call.1} parent=1 // pred_check
      _
    $region7: #{tpu_custom_call.1} parent=1 // pred_check_branch
      %16 = sbr.rel (0) target = $region9
    $region8: #{tpu_custom_call.1} parent=1 // pred_region
      _
    $region9: #{tpu_custom_call.1} parent=1 // pred_fallthru
      _
    // Predicated region
    $region10: #{tpu_custom_call.1} parent=1 // pred_check
      _
    $region11: #{tpu_custom_call.1} parent=1 // pred_check_branch
      %18 = sbr.rel (0) target = $region13
    $region12: #{tpu_custom_call.1} parent=1 // pred_region
      _
    $region13: #{tpu_custom_call.1} parent=1 // pred_fallthru
      _
    // Predicated region
    $region14: #{tpu_custom_call.1} parent=1 // pred_check
      _
    $region15: #{tpu_custom_call.1} parent=1 // pred_check_branch
      %20 = sbr.rel (0) target = $region17
    $region16: #{tpu_custom_call.1} parent=1 // pred_region
      _
    $region17: #{tpu_custom_call.1} parent=1 // pred_fallthru
      _
    %v22 = vld [vmem:[%s0] sm:$0xf]
    %v23 = vld [vmem:[%s1] sm:$0xff]
    %v24 = vunpack.c.l.bf16 %v22
    %26 = vset.pattern.permute.xlu0 0
    %27 = vperm.xlu0 %26, %v23
    %v28 = vpop.permute.xlu0 %27
    %v30 = vmul.f32 %v24, %v28
    %vm31 = vcmask 261120
    %v32 = vsel %vm31, %v30, 0.0
    %v33 = vrot.slane %v32, 4
    %v34 = vadd.f32 %v32, %v33
    %v35 = vrot.slane %v34, 2
    %v36 = vadd.f32 %v34, %v35
    %v37 = vrot.slane %v36, 1
    %v38 = vadd.f32 %v36, %v37
    %vm39 = vcmask 253952
    %40 = vst.msk [vmem:[#allocation4] sm:$0x1] %vm39, %v38
    %v41 = vld [vmem:[%s0 + $0x4] sm:$0xf]
    %v42 = vld [vmem:[%s1 + $0x8] sm:$0xff]
    %v43 = vunpack.c.l.bf16 %v41
    %45 = vset.pattern.permute.xlu0 0
    %46 = vperm.xlu0 %45, %v42
    %v47 = vpop.permute.xlu0 %46
    %v49 = vmul.f32 %v43, %v47
    %v50 = vsel %vm31, %v49, 0.0
    %v51 = vrot.slane %v50, 4
    %v52 = vadd.f32 %v50, %v51
    %v53 = vrot.slane %v52, 2
    %v54 = vadd.f32 %v52, %v53
    %v55 = vrot.slane %v54, 1
    %v56 = vadd.f32 %v54, %v55
    %57 = vst.msk [vmem:[#allocation4 + $0x1] sm:$0x1] %vm39, %v56
    %v58 = vld [vmem:[%s0 + $0x8] sm:$0xf]
    %v59 = vld [vmem:[%s1 + $0x10] sm:$0xff]
    %v60 = vunpack.c.l.bf16 %v58
    %62 = vset.pattern.permute.xlu0 0
    %63 = vperm.xlu0 %62, %v59
    %v64 = vpop.permute.xlu0 %63
    %v66 = vmul.f32 %v60, %v64
    %v67 = vsel %vm31, %v66, 0.0
    %v68 = vrot.slane %v67, 4
    %v69 = vadd.f32 %v67, %v68
    %v70 = vrot.slane %v69, 2
    %v71 = vadd.f32 %v69, %v70
    %v72 = vrot.slane %v71, 1
    %v73 = vadd.f32 %v71, %v72
    %74 = vst.msk [vmem:[#allocation4 + $0x2] sm:$0x1] %vm39, %v73
    %v75 = vld [vmem:[%s0 + $0xc] sm:$0xf]
    %v76 = vld [vmem:[%s1 + $0x18] sm:$0xff]
    %v77 = vunpack.c.l.bf16 %v75
    %79 = vset.pattern.permute.xlu0 0
    %80 = vperm.xlu0 %79, %v76
    %v81 = vpop.permute.xlu0 %80
    %v83 = vmul.f32 %v77, %v81
    %v84 = vsel %vm31, %v83, 0.0
    %v85 = vrot.slane %v84, 4
    %v86 = vadd.f32 %v84, %v85
    %v87 = vrot.slane %v86, 2
    %v88 = vadd.f32 %v86, %v87
    %v89 = vrot.slane %v88, 1
    %v90 = vadd.f32 %v88, %v89
    %91 = vst.msk [vmem:[#allocation4 + $0x3] sm:$0x1] %vm39, %v90
    %v92 = vld [vmem:[%s0] sm:$0xf]
    %v93 = vld [vmem:[%s0 + $0x4] sm:$0xf]
    %v94 = vld [vmem:[%s0 + $0x8] sm:$0xf]
    %v95 = vld [vmem:[%s0 + $0xc] sm:$0xf]
    %v96 = vld [vmem:[%s2] sm:$0xf]
    %v97 = vld [vmem:[%s3] sm:$0x1]
    %v99 = vlaneseq
    %v100 = vshrl.u32 %v99, 7
    %v101 = vsub.s32 0, %v100
    %v102 = vrot.slane %v97, %v101
    %v108 = vunpack.c.l.b16 %v92
    %v109 = vunpack.c.l.b16 %v93
    %v110 = vunpack.c.l.b16 %v94
    %v111 = vunpack.c.l.b16 %v95
    %v112 = vpack.c.b16 %v109, %v108
    %v113 = vpack.c.b16 %v111, %v110
    %vm114 = vcmask 64512
    %v116 = vsel %vm114, %v112, 0
    %v119 = vsel %vm114, %v113, 0
    %vm121 = vcmask 1043456
    %v123 = vsel %vm121, %v96, 0
    %125 = vmatprep.subr.bf16.mxu0 0
    %126 = vmatpush1.bf16.msra.mxu0 0
    %127 = vmatprep.subr.bf16.mxu0 0
    %128 = vmatpush1.bf16.msra.mxu0 0
    %129 = vmatprep.subr.bf16.mxu0 0
    %130 = vmatpush1.bf16.msra.mxu0 0
    %131 = vmatprep.subr.bf16.mxu0 0
    %132 = vmatpush1.bf16.msra.mxu0 0
    %133 = vmatprep.subr.bf16.mxu0 0
    %134 = vmatpush1.bf16.msra.mxu0 0
    %135 = vmatprep.subr.bf16.mxu0 0
    %136 = vmatpush1.bf16.msra.mxu0 0
    %137 = vmatprep.subr.bf16.mxu0 0
    %138 = vmatpush1.bf16.msra.mxu0 0
    %139 = vmatprep.subr.bf16.mxu0 0
    %140 = vmatpush1.bf16.msra.mxu0 %v123
    %141 = vmatprep.subr.bf16.mxu0 0
    %142 = vmatpush2.bf16.msra.mxu0 0
    %143 = vmatprep.subr.bf16.mxu0 0
    %144 = vmatpush2.bf16.msra.mxu0 0
    %145 = vmatprep.subr.bf16.mxu0 0
    %146 = vmatpush2.bf16.msra.mxu0 0
    %147 = vmatprep.subr.bf16.mxu0 0
    %148 = vmatpush2.bf16.msra.mxu0 0
    %149 = vmatprep.subr.bf16.mxu0 0
    %150 = vmatpush2.bf16.msra.mxu0 0
    %151 = vmatprep.subr.bf16.mxu0 0
    %152 = vmatpush2.bf16.msra.mxu0 0
    %153 = vmatprep.subr.bf16.mxu0 0
    %154 = vmatpush2.bf16.msra.mxu0 0
    %155 = vmatprep.subr.bf16.mxu0 0
    %156 = vmatpush2.bf16.msra.mxu0 0
    %157 = vmatprep.mubr.bf16.mxu0 0
    %158 = vmatmul.mubr.bf16.gmra.mxu0 %v116
    %v159 = vpop.f32.mrf.mxu0
    %v160 = vadd.f32 %v102, %v159
    %v161 = vpop.f32.mrf.mxu0
    %v162 = vpop.f32.mrf.mxu0
    %v163 = vadd.f32 %v102, %v162
    %v164 = vpop.f32.mrf.mxu0
    %165 = vmatprep.mubr.bf16.mxu0 0
    %166 = vmatmul.mubr.bf16.gmra.mxu0 %v119
    %v167 = vpop.f32.mrf.mxu0
    %v168 = vadd.f32 %v102, %v167
    %v169 = vpop.f32.mrf.mxu0
    %v170 = vpop.f32.mrf.mxu0
    %v171 = vadd.f32 %v102, %v170
    %v172 = vpop.f32.mrf.mxu0
    %173 = vdwg.mxu0
    %v174 = vpack.c.bf16 %v163, %v160
    %v175 = vpack.c.bf16 %v171, %v168
    %v178 = vunpack.c.l.b16 %v174
    %v179 = vunpack.c.h.b16 %v174
    %v180 = vunpack.c.l.b16 %v175
    %v181 = vunpack.c.h.b16 %v175
    %v182 = vpack.c.b16 %v178, %v178
    %v183 = vpack.c.b16 %v179, %v179
    %v184 = vpack.c.b16 %v180, %v180
    %v185 = vpack.c.b16 %v181, %v181
    %vm190 = vcmask 257024
    %191 = vst.msk [vmem:[#allocation2] sm:$0xf] %vm190, %v182
    %192 = vst.msk [vmem:[#allocation2 + $0x4] sm:$0xf] %vm190, %v183
    %193 = vst.msk [vmem:[#allocation2 + $0x8] sm:$0xf] %vm190, %v184
    %194 = vst.msk [vmem:[#allocation2 + $0xc] sm:$0xf] %vm190, %v185
    %v195 = vld [vmem:[%s0] sm:$0xf]
    %v196 = vld [vmem:[%s0 + $0x4] sm:$0xf]
    %v197 = vld [vmem:[%s0 + $0x8] sm:$0xf]
    %v198 = vld [vmem:[%s0 + $0xc] sm:$0xf]
    %s199 = scalar_lea.vmem %s2, 4
    %v200 = vld [vmem:[%s199] sm:$0xf]
    %s201 = scalar_lea.vmem %s3, 1
    %v202 = vld [vmem:[%s201] sm:$0x1]
    %v204 = vlaneseq
    %v205 = vshrl.u32 %v204, 7
    %v206 = vsub.s32 0, %v205
    %v207 = vrot.slane %v202, %v206
    %v213 = vunpack.c.l.b16 %v195
    %v214 = vunpack.c.l.b16 %v196
    %v215 = vunpack.c.l.b16 %v197
    %v216 = vunpack.c.l.b16 %v198
    %v217 = vpack.c.b16 %v214, %v213
    %v218 = vpack.c.b16 %v216, %v215
    %219 = vrot.lane.b32.xlu0 %v217, 120
    %v220 = vpop.permute.xlu0 %219
    %221 = vrot.lane.b32.xlu0 %v218, 120
    %v222 = vpop.permute.xlu0 %221
    %v224 = vsel %vm114, %v220, 0
    %v227 = vsel %vm114, %v222, 0
    %v230 = vsel %vm121, %v200, 0
    %232 = vmatprep.subr.bf16.mxu0 0
    %233 = vmatpush1.bf16.msra.mxu0 0
    %234 = vmatprep.subr.bf16.mxu0 0
    %235 = vmatpush1.bf16.msra.mxu0 0
    %236 = vmatprep.subr.bf16.mxu0 0
    %237 = vmatpush1.bf16.msra.mxu0 0
    %238 = vmatprep.subr.bf16.mxu0 0
    %239 = vmatpush1.bf16.msra.mxu0 0
    %240 = vmatprep.subr.bf16.mxu0 0
    %241 = vmatpush1.bf16.msra.mxu0 0
    %242 = vmatprep.subr.bf16.mxu0 0
    %243 = vmatpush1.bf16.msra.mxu0 0
    %244 = vmatprep.subr.bf16.mxu0 0
    %245 = vmatpush1.bf16.msra.mxu0 0
    %246 = vmatprep.subr.bf16.mxu0 0
    %247 = vmatpush1.bf16.msra.mxu0 %v230
    %248 = vmatprep.subr.bf16.mxu0 0
    %249 = vmatpush2.bf16.msra.mxu0 0
    %250 = vmatprep.subr.bf16.mxu0 0
    %251 = vmatpush2.bf16.msra.mxu0 0
    %252 = vmatprep.subr.bf16.mxu0 0
    %253 = vmatpush2.bf16.msra.mxu0 0
    %254 = vmatprep.subr.bf16.mxu0 0
    %255 = vmatpush2.bf16.msra.mxu0 0
    %256 = vmatprep.subr.bf16.mxu0 0
    %257 = vmatpush2.bf16.msra.mxu0 0
    %258 = vmatprep.subr.bf16.mxu0 0
    %259 = vmatpush2.bf16.msra.mxu0 0
    %260 = vmatprep.subr.bf16.mxu0 0
    %261 = vmatpush2.bf16.msra.mxu0 0
    %262 = vmatprep.subr.bf16.mxu0 0
    %263 = vmatpush2.bf16.msra.mxu0 0
    %264 = vmatprep.mubr.bf16.mxu0 0
    %265 = vmatmul.mubr.bf16.gmra.mxu0 %v224
    %v266 = vpop.f32.mrf.mxu0
    %v267 = vadd.f32 %v207, %v266
    %v268 = vpop.f32.mrf.mxu0
    %v269 = vpop.f32.mrf.mxu0
    %v270 = vadd.f32 %v207, %v269
    %v271 = vpop.f32.mrf.mxu0
    %272 = vmatprep.mubr.bf16.mxu0 0
    %273 = vmatmul.mubr.bf16.gmra.mxu0 %v227
    %v274 = vpop.f32.mrf.mxu0
    %v275 = vadd.f32 %v207, %v274
    %v276 = vpop.f32.mrf.mxu0
    %v277 = vpop.f32.mrf.mxu0
    %v278 = vadd.f32 %v207, %v277
    %v279 = vpop.f32.mrf.mxu0
    %280 = vdwg.mxu0
    %v281 = vpack.c.bf16 %v270, %v267
    %v282 = vpack.c.bf16 %v278, %v275
    %v285 = vunpack.c.l.b16 %v281
    %v286 = vunpack.c.h.b16 %v281
    %v287 = vunpack.c.l.b16 %v282
    %v288 = vunpack.c.h.b16 %v282
    %v289 = vpack.c.b16 %v285, %v285
    %v290 = vpack.c.b16 %v286, %v286
    %v291 = vpack.c.b16 %v287, %v287
    %v292 = vpack.c.b16 %v288, %v288
    %s297 = scalar_lea.vmem [#allocation2], 16
    %298 = vst.msk [vmem:[%s297] sm:$0xf] %vm190, %v289
    %299 = vst.msk [vmem:[%s297 + $0x4] sm:$0xf] %vm190, %v290
    %300 = vst.msk [vmem:[%s297 + $0x8] sm:$0xf] %vm190, %v291
    %301 = vst.msk [vmem:[%s297 + $0xc] sm:$0xf] %vm190, %v292
    %v302 = vld [vmem:[%s0] sm:$0xf]
    %v303 = vld [vmem:[%s0 + $0x4] sm:$0xf]
    %v304 = vld [vmem:[%s0 + $0x8] sm:$0xf]
    %v305 = vld [vmem:[%s0 + $0xc] sm:$0xf]
    %s306 = scalar_lea.vmem %s2, 8
    %v307 = vld [vmem:[%s306] sm:$0xf]
    %s308 = scalar_lea.vmem %s3, 2
    %v309 = vld [vmem:[%s308] sm:$0x1]
    %v311 = vlaneseq
    %v312 = vshrl.u32 %v311, 7
    %v313 = vsub.s32 0, %v312
    %v314 = vrot.slane %v309, %v313
    %v320 = vunpack.c.l.b16 %v302
    %v321 = vunpack.c.l.b16 %v303
    %v322 = vunpack.c.l.b16 %v304
    %v323 = vunpack.c.l.b16 %v305
    %v324 = vpack.c.b16 %v321, %v320
    %v325 = vpack.c.b16 %v323, %v322
    %326 = vrot.lane.b32.xlu0 %v324, 112
    %v327 = vpop.permute.xlu0 %326
    %328 = vrot.lane.b32.xlu0 %v325, 112
    %v329 = vpop.permute.xlu0 %328
    %v331 = vsel %vm114, %v327, 0
    %v334 = vsel %vm114, %v329, 0
    %v337 = vsel %vm121, %v307, 0
    %339 = vmatprep.subr.bf16.mxu0 0
    %340 = vmatpush1.bf16.msra.mxu0 0
    %341 = vmatprep.subr.bf16.mxu0 0
    %342 = vmatpush1.bf16.msra.mxu0 0
    %343 = vmatprep.subr.bf16.mxu0 0
    %344 = vmatpush1.bf16.msra.mxu0 0
    %345 = vmatprep.subr.bf16.mxu0 0
    %346 = vmatpush1.bf16.msra.mxu0 0
    %347 = vmatprep.subr.bf16.mxu0 0
    %348 = vmatpush1.bf16.msra.mxu0 0
    %349 = vmatprep.subr.bf16.mxu0 0
    %350 = vmatpush1.bf16.msra.mxu0 0
    %351 = vmatprep.subr.bf16.mxu0 0
    %352 = vmatpush1.bf16.msra.mxu0 0
    %353 = vmatprep.subr.bf16.mxu0 0
    %354 = vmatpush1.bf16.msra.mxu0 %v337
    %355 = vmatprep.subr.bf16.mxu0 0
    %356 = vmatpush2.bf16.msra.mxu0 0
    %357 = vmatprep.subr.bf16.mxu0 0
    %358 = vmatpush2.bf16.msra.mxu0 0
    %359 = vmatprep.subr.bf16.mxu0 0
    %360 = vmatpush2.bf16.msra.mxu0 0
    %361 = vmatprep.subr.bf16.mxu0 0
    %362 = vmatpush2.bf16.msra.mxu0 0
    %363 = vmatprep.subr.bf16.mxu0 0
    %364 = vmatpush2.bf16.msra.mxu0 0
    %365 = vmatprep.subr.bf16.mxu0 0
    %366 = vmatpush2.bf16.msra.mxu0 0
    %367 = vmatprep.subr.bf16.mxu0 0
    %368 = vmatpush2.bf16.msra.mxu0 0
    %369 = vmatprep.subr.bf16.mxu0 0
    %370 = vmatpush2.bf16.msra.mxu0 0
    %371 = vmatprep.mubr.bf16.mxu0 0
    %372 = vmatmul.mubr.bf16.gmra.mxu0 %v331
    %v373 = vpop.f32.mrf.mxu0
    %v374 = vadd.f32 %v314, %v373
    %v375 = vpop.f32.mrf.mxu0
    %v376 = vpop.f32.mrf.mxu0
    %v377 = vadd.f32 %v314, %v376
    %v378 = vpop.f32.mrf.mxu0
    %379 = vmatprep.mubr.bf16.mxu0 0
    %380 = vmatmul.mubr.bf16.gmra.mxu0 %v334
    %v381 = vpop.f32.mrf.mxu0
    %v382 = vadd.f32 %v314, %v381
    %v383 = vpop.f32.mrf.mxu0
    %v384 = vpop.f32.mrf.mxu0
    %v385 = vadd.f32 %v314, %v384
    %v386 = vpop.f32.mrf.mxu0
    %387 = vdwg.mxu0
    %v388 = vpack.c.bf16 %v377, %v374
    %v389 = vpack.c.bf16 %v385, %v382
    %v392 = vunpack.c.l.b16 %v388
    %v393 = vunpack.c.h.b16 %v388
    %v394 = vunpack.c.l.b16 %v389
    %v395 = vunpack.c.h.b16 %v389
    %v396 = vpack.c.b16 %v392, %v392
    %v397 = vpack.c.b16 %v393, %v393
    %v398 = vpack.c.b16 %v394, %v394
    %v399 = vpack.c.b16 %v395, %v395
    %s404 = scalar_lea.vmem [#allocation2], 32
    %405 = vst.msk [vmem:[%s404] sm:$0xf] %vm190, %v396
    %406 = vst.msk [vmem:[%s404 + $0x4] sm:$0xf] %vm190, %v397
    %407 = vst.msk [vmem:[%s404 + $0x8] sm:$0xf] %vm190, %v398
    %408 = vst.msk [vmem:[%s404 + $0xc] sm:$0xf] %vm190, %v399
    %v409 = vld [vmem:[%s0] sm:$0xf]
    %v410 = vld [vmem:[%s0 + $0x4] sm:$0xf]
    %v411 = vld [vmem:[%s0 + $0x8] sm:$0xf]
    %v412 = vld [vmem:[%s0 + $0xc] sm:$0xf]
    %s413 = scalar_lea.vmem %s2, 12
    %v414 = vld [vmem:[%s413] sm:$0xf]
    %s415 = scalar_lea.vmem %s3, 3
    %v416 = vld [vmem:[%s415] sm:$0x1]
    %v418 = vlaneseq
    %v419 = vshrl.u32 %v418, 7
    %v420 = vsub.s32 0, %v419
    %v421 = vrot.slane %v416, %v420
    %v427 = vunpack.c.l.b16 %v409
    %v428 = vunpack.c.l.b16 %v410
    %v429 = vunpack.c.l.b16 %v411
    %v430 = vunpack.c.l.b16 %v412
    %v431 = vpack.c.b16 %v428, %v427
    %v432 = vpack.c.b16 %v430, %v429
    %433 = vrot.lane.b32.xlu0 %v431, 104
    %v434 = vpop.permute.xlu0 %433
    %435 = vrot.lane.b32.xlu0 %v432, 104
    %v436 = vpop.permute.xlu0 %435
    %v438 = vsel %vm114, %v434, 0
    %v441 = vsel %vm114, %v436, 0
    %v444 = vsel %vm121, %v414, 0
    %446 = vmatprep.subr.bf16.mxu0 0
    %447 = vmatpush1.bf16.msra.mxu0 0
    %448 = vmatprep.subr.bf16.mxu0 0
    %449 = vmatpush1.bf16.msra.mxu0 0
    %450 = vmatprep.subr.bf16.mxu0 0
    %451 = vmatpush1.bf16.msra.mxu0 0
    %452 = vmatprep.subr.bf16.mxu0 0
    %453 = vmatpush1.bf16.msra.mxu0 0
    %454 = vmatprep.subr.bf16.mxu0 0
    %455 = vmatpush1.bf16.msra.mxu0 0
    %456 = vmatprep.subr.bf16.mxu0 0
    %457 = vmatpush1.bf16.msra.mxu0 0
    %458 = vmatprep.subr.bf16.mxu0 0
    %459 = vmatpush1.bf16.msra.mxu0 0
    %460 = vmatprep.subr.bf16.mxu0 0
    %461 = vmatpush1.bf16.msra.mxu0 %v444
    %462 = vmatprep.subr.bf16.mxu0 0
    %463 = vmatpush2.bf16.msra.mxu0 0
    %464 = vmatprep.subr.bf16.mxu0 0
    %465 = vmatpush2.bf16.msra.mxu0 0
    %466 = vmatprep.subr.bf16.mxu0 0
    %467 = vmatpush2.bf16.msra.mxu0 0
    %468 = vmatprep.subr.bf16.mxu0 0
    %469 = vmatpush2.bf16.msra.mxu0 0
    %470 = vmatprep.subr.bf16.mxu0 0
    %471 = vmatpush2.bf16.msra.mxu0 0
    %472 = vmatprep.subr.bf16.mxu0 0
    %473 = vmatpush2.bf16.msra.mxu0 0
    %474 = vmatprep.subr.bf16.mxu0 0
    %475 = vmatpush2.bf16.msra.mxu0 0
    %476 = vmatprep.subr.bf16.mxu0 0
    %477 = vmatpush2.bf16.msra.mxu0 0
    %478 = vmatprep.mubr.bf16.mxu0 0
    %479 = vmatmul.mubr.bf16.gmra.mxu0 %v438
    %v480 = vpop.f32.mrf.mxu0
    %v481 = vadd.f32 %v421, %v480
    %v482 = vpop.f32.mrf.mxu0
    %v483 = vpop.f32.mrf.mxu0
    %v484 = vadd.f32 %v421, %v483
    %v485 = vpop.f32.mrf.mxu0
    %486 = vmatprep.mubr.bf16.mxu0 0
    %487 = vmatmul.mubr.bf16.gmra.mxu0 %v441
    %v488 = vpop.f32.mrf.mxu0
    %v489 = vadd.f32 %v421, %v488
    %v490 = vpop.f32.mrf.mxu0
    %v491 = vpop.f32.mrf.mxu0
    %v492 = vadd.f32 %v421, %v491
    %v493 = vpop.f32.mrf.mxu0
    %494 = vdwg.mxu0
    %v495 = vpack.c.bf16 %v484, %v481
    %v496 = vpack.c.bf16 %v492, %v489
    %v499 = vunpack.c.l.b16 %v495
    %v500 = vunpack.c.h.b16 %v495
    %v501 = vunpack.c.l.b16 %v496
    %v502 = vunpack.c.h.b16 %v496
    %v503 = vpack.c.b16 %v499, %v499
    %v504 = vpack.c.b16 %v500, %v500
    %v505 = vpack.c.b16 %v501, %v501
    %v506 = vpack.c.b16 %v502, %v502
    %s511 = scalar_lea.vmem [#allocation2], 48
    %512 = vst.msk [vmem:[%s511] sm:$0xf] %vm190, %v503
    %513 = vst.msk [vmem:[%s511 + $0x4] sm:$0xf] %vm190, %v504
    %514 = vst.msk [vmem:[%s511 + $0x8] sm:$0xf] %vm190, %v505
    %515 = vst.msk [vmem:[%s511 + $0xc] sm:$0xf] %vm190, %v506
    // Predicated region
    $region18: #{tpu_custom_call.1} parent=1 // pred_check
      _
    $region19: #{tpu_custom_call.1} parent=1 // pred_check_branch
      %517 = sbr.rel (0) target = $region21
    $region20: #{tpu_custom_call.1} parent=1 // pred_region
      %s519 = ssub.s32 1024, 1024
      %520 = vsyncadd [#allocation3], %s519
      %s521 = sshll.u32 [#allocation2], 4
      %s522 = int_to_ptr.vmem [resolvable:$true] %s521
      %527 = dma.vmem_to_hbm [thread:$0]  %s522, 1024, %s4, [#allocation3], 64, 64, 4
    $region21: #{tpu_custom_call.1} parent=1 // pred_fallthru
      _
    // Predicated region
    $region22: #{tpu_custom_call.1} parent=1 // pred_check
      _
    $region23: #{tpu_custom_call.1} parent=1 // pred_check_branch
      %529 = sbr.rel (0) target = $region25
    $region24: #{tpu_custom_call.1} parent=1 // pred_region
      %s531 = ssub.s32 64, 64
      %532 = vsyncadd [#allocation5], %s531
      %s534 = sshll.u32 [#allocation4], 4
      %s535 = int_to_ptr.vmem [resolvable:$true] %s534
      %537 = dma.vmem_to_hbm [thread:$0]  %s535, 64, %s5, [#allocation5]
    $region25: #{tpu_custom_call.1} parent=1 // pred_fallthru
      _
    // Predicated region
    $region26: #{tpu_custom_call.1} parent=1 // pred_check
      _
    $region27: #{tpu_custom_call.1} parent=1 // pred_check_branch
      %539 = sbr.rel (0) target = $region29
    $region28: #{tpu_custom_call.1} parent=1 // pred_region
      %540 = dma.done [#allocation3], 1024
    $region29: #{tpu_custom_call.1} parent=1 // pred_fallthru
      _
    // Predicated region
    $region30: #{tpu_custom_call.1} parent=1 // pred_check
      _
    $region31: #{tpu_custom_call.1} parent=1 // pred_check_branch
      %542 = sbr.rel (0) target = $region33
    $region32: #{tpu_custom_call.1} parent=1 // pred_region
      %543 = dma.done [#allocation5], 64
    $region33: #{tpu_custom_call.1} parent=1 // pred_fallthru
      _
    %544 = vsyncpa [#allocation3], 1
    %545 = vsyncpa [#allocation5], 1

</llo_original>
